<compile_context>
chip_gen: v7x
topology: tpu7x:2x2x1
jax: 0.10.0
libtpu: 0.0.40
codegen_flags: <defaults>
</compile_context>

<pallas_src>
import functools

import jax
import jax.numpy as jnp
from jax import lax
from jax.experimental import pallas as pl
from jax.experimental.pallas import tpu as pltpu

NEG_PAD = -1e30  # column-padding value: finite, but vanishes in logsumexp


def _round_up(x, m):
    return (x + m - 1) // m * m


def _focal_ce_kernel(x_ref, t_ref, o_ref, acc_ref, *, n_valid, gamma, tile_m):
    """One grid step: CE of a (tile_m, Cp) row tile, accumulated into acc_ref."""
    i = pl.program_id(0)

    @pl.when(i == 0)
    def _init():
        acc_ref[...] = jnp.zeros_like(acc_ref)

    x = x_ref[...]                                  # (TM, Cp) f32
    tgt = t_ref[...]                                # (TM, 1)  int32
    tm, cp = x.shape

    # Row-wise log-sum-exp (numerically stable, f32).
    m = jnp.max(x, axis=-1, keepdims=True)                           # (TM, 1)
    lse = m + jnp.log(jnp.sum(jnp.exp(x - m), axis=-1, keepdims=True))

    # Gather logits[row, target[row]] via one-hot compare (no dynamic gather).
    col = lax.broadcasted_iota(jnp.int32, (tm, cp), 1)
    picked = jnp.sum(jnp.where(col == tgt, x, 0.0), axis=-1, keepdims=True)

    ce = lse - picked                                                 # (TM, 1)

    # Mask out rows that only exist because of padding to the tile size.
    row = lax.broadcasted_iota(jnp.int32, (tm, 1), 0) + i * tile_m
    ce = jnp.where(row < n_valid, ce, 0.0)

    acc_ref[...] += jnp.sum(ce, keepdims=True)                        # (1, 1)

    @pl.when(i == pl.num_programs(0) - 1)
    def _finalize():
        mean_ce = acc_ref[...] * (1.0 / n_valid)                      # (1, 1)
        g = float(gamma)
        if g == 0.0:                          # (1 - p) ** 0 == 1  (static)
            loss = mean_ce
        else:
            base = 1.0 - jnp.exp(-mean_ce)    # in [0, 1)
            if g == int(g) and g > 0:         # integer gamma: repeated multiply
                w = base
                for _ in range(int(g) - 1):
                    w = w * base
            else:                             # real gamma: exp(g * log(base))
                w = jnp.where(base > 0.0,
                              jnp.exp(g * jnp.log(jnp.maximum(base, 1e-38))),
                              0.0)
            loss = w * mean_ce
        o_ref[...] = loss.astype(o_ref.dtype)


def focal_loss(logits, targets, gamma=0.0):
    """Pallas TPU FocalLoss forward. logits: (N, C) float, targets: (N,) int."""
    n, c = logits.shape
    cp = _round_up(c, 128)                    # lane-dense class axis
    npad = _round_up(n, 8)
    tile_m = min(npad, 256)                   # row tile: multiple of 8, VMEM-safe
    npad = _round_up(npad, tile_m)

    x = jnp.pad(logits.astype(jnp.float32),
                ((0, npad - n), (0, cp - c)), constant_values=NEG_PAD)
    t = jnp.pad(targets.astype(jnp.int32), (0, npad - n)).reshape(npad, 1)

    out = pl.pallas_call(
        functools.partial(_focal_ce_kernel, n_valid=n, gamma=float(gamma),
                          tile_m=tile_m),
        out_shape=jax.ShapeDtypeStruct((1, 1), jnp.float32),
        grid_spec=pltpu.PrefetchScalarGridSpec(
            num_scalar_prefetch=0,
            grid=(npad // tile_m,),
            in_specs=[
                pl.BlockSpec((tile_m, cp), lambda i: (i, 0)),   # logits tile
                pl.BlockSpec((tile_m, 1), lambda i: (i, 0)),    # targets tile
            ],
            out_specs=pl.BlockSpec((1, 1), lambda i: (0, 0)),   # resident scalar
            scratch_shapes=[pltpu.VMEM((1, 1), jnp.float32)],   # CE-sum accumulator
        ),
        compiler_params=pltpu.CompilerParams(
            dimension_semantics=("arbitrary",)),                # reduction axis
    )(x, t)
    return out[0, 0]


def focal_loss_ref(logits, targets, gamma=0.0):
    """Pure-JAX reference matching the PyTorch module."""
    logits = logits.astype(jnp.float32)
    logp = jax.nn.log_softmax(logits, axis=-1)
    ce = -jnp.take_along_axis(logp, targets[:, None].astype(jnp.int32), axis=-1)[:, 0]
    mean_ce = jnp.mean(ce)                    # CrossEntropyLoss(reduction='mean')
    p = jnp.exp(-mean_ce)
    return (1.0 - p) ** gamma * mean_ce       # .mean() of a scalar is a no-op


if __name__ == "__main__":
    key = jax.random.PRNGKey(0)
    kx, kt = jax.random.split(key)
    N, C = 10, 100                            # small; exercises row + lane padding
    logits = jax.random.normal(kx, (N, C), jnp.float32) * 3.0
    targets = jax.random.randint(kt, (N,), 0, C, dtype=jnp.int32)

    fwd = jax.jit(focal_loss, static_argnames=("gamma",))

    ok = True
    for gamma in (0.0, 2.0):                  # module default and InsightFace's gamma=2
        got = fwd(logits, targets, gamma=gamma)
        jax.block_until_ready(got)
        want = focal_loss_ref(logits, targets, gamma)
        ok &= bool(jnp.isfinite(got))
        ok &= bool(jnp.allclose(got, want, rtol=1e-5, atol=1e-6))

    assert ok
    print("KERNEL_OK")
</pallas_src>

<mosaic_0001>
module attributes {stable_mosaic.version = 11 : i64} {
  func.func @_focal_ce_kernel(%arg0: i32, %arg1: memref<16x128xf32, #tpu.memory_space<vmem>>, %arg2: memref<16x1xi32, #tpu.memory_space<vmem>>, %arg3: memref<1x1xf32, #tpu.memory_space<vmem>>, %arg4: memref<1x1xf32, #tpu.memory_space<vmem>>) attributes {dimension_semantics = [#tpu.dimension_semantics<arbitrary>], iteration_bounds = array<i64: 1>, scalar_prefetch = 0 : i64, scratch_operands = 1 : i64, tpu.core_type = #tpu.core_type<tc>, window_params = [{transform_indices = @transform_0, window_bounds = array<i64: 16, 128>}, {transform_indices = @transform_1, window_bounds = array<i64: 16, 1>}, {pipeline_mode = #tpu.pipeline_mode<synchronous>, transform_indices = @transform_2, window_bounds = array<i64: 1, 1>}]} {
    %c0_i32 = arith.constant 0 : i32
    %0 = arith.cmpi eq, %arg0, %c0_i32 : i32
    %1 = arith.extui %0 : i1 to i32
    %c0_i32_0 = arith.constant 0 : i32
    %2 = arith.cmpi ne, %1, %c0_i32_0 : i32
    scf.if %2 {
      %cst_15 = arith.constant 0.000000e+00 : f32
      %41 = vector.broadcast %cst_15 : f32 to vector<1x1xf32>
      %c0_16 = arith.constant 0 : index
      %c0_17 = arith.constant 0 : index
      %42 = vector.load %arg4[%c0_16, %c0_17] : memref<1x1xf32, #tpu.memory_space<vmem>>, vector<1x1xf32>
      tpu.vector_store %arg4[%c0_16, %c0_17], %41 {strides = array<i32>} : memref<1x1xf32, #tpu.memory_space<vmem>>, vector<1x1xf32>,
    } else {
    }
    %c0 = arith.constant 0 : index
    %c0_1 = arith.constant 0 : index
    %3 = vector.load %arg1[%c0, %c0_1] : memref<16x128xf32, #tpu.memory_space<vmem>>, vector<16x128xf32>
    %c0_2 = arith.constant 0 : index
    %c0_3 = arith.constant 0 : index
    %4 = vector.load %arg2[%c0_2, %c0_3] : memref<16x1xi32, #tpu.memory_space<vmem>>, vector<16x1xi32>
    %cst = arith.constant dense<0xFF800000> : vector<16xf32>
    %5 = vector.multi_reduction <maximumf>, %3, %cst [1] : vector<16x128xf32> to vector<16xf32>
    %6 = vector.shape_cast %5 : vector<16xf32> to vector<16x1xf32>
    %7 = vector.broadcast %6 : vector<16x1xf32> to vector<16x128xf32>
    %8 = arith.subf %3, %7 : vector<16x128xf32>
    %9 = math.exp %8 : vector<16x128xf32>
    %cst_4 = arith.constant dense<0.000000e+00> : vector<16xf32>
    %10 = vector.multi_reduction <add>, %9, %cst_4 [1] : vector<16x128xf32> to vector<16xf32>
    %11 = vector.shape_cast %10 : vector<16xf32> to vector<16x1xf32>
    %12 = math.log %11 : vector<16x1xf32>
    %13 = arith.addf %6, %12 : vector<16x1xf32>
    %14 = tpu.iota {dimensions = array<i32: 1>} : vector<16x128xi32>
    %15 = vector.broadcast %4 : vector<16x1xi32> to vector<16x128xi32>
    %16 = arith.cmpi eq, %14, %15 : vector<16x128xi32>
    %cst_5 = arith.constant 0.000000e+00 : f32
    %17 = vector.broadcast %cst_5 : f32 to vector<16x128xf32>
    %18 = arith.select %16, %3, %17 : vector<16x128xi1>, vector<16x128xf32>
    %cst_6 = arith.constant dense<0.000000e+00> : vector<16xf32>
    %19 = vector.multi_reduction <add>, %18, %cst_6 [1] : vector<16x128xf32> to vector<16xf32>
    %20 = vector.shape_cast %19 : vector<16xf32> to vector<16x1xf32>
    %21 = arith.subf %13, %20 : vector<16x1xf32>
    %22 = tpu.iota {dimensions = array<i32: 0>} : vector<16x1xi32>
    %c16_i32 = arith.constant 16 : i32
    %23 = arith.muli %arg0, %c16_i32 : i32
    %24 = vector.broadcast %23 : i32 to vector<16x1xi32>
    %25 = arith.addi %22, %24 : vector<16x1xi32>
    %c10_i32 = arith.constant 10 : i32
    %26 = vector.broadcast %c10_i32 : i32 to vector<16x1xi32>
    %27 = arith.cmpi slt, %25, %26 : vector<16x1xi32>
    %cst_7 = arith.constant 0.000000e+00 : f32
    %28 = vector.broadcast %cst_7 : f32 to vector<16x1xf32>
    %29 = arith.select %27, %21, %28 : vector<16x1xi1>, vector<16x1xf32>
    %c0_8 = arith.constant 0 : index
    %c0_9 = arith.constant 0 : index
    %30 = vector.load %arg4[%c0_8, %c0_9] : memref<1x1xf32, #tpu.memory_space<vmem>>, vector<1x1xf32>
    %31 = vector.shape_cast %29 : vector<16x1xf32> to vector<1x16x1xf32>
    %cst_10 = arith.constant dense<0.000000e+00> : vector<1xf32>
    %32 = vector.multi_reduction <add>, %31, %cst_10 [1, 2] : vector<1x16x1xf32> to vector<1xf32>
    %33 = vector.shape_cast %32 : vector<1xf32> to vector<1x1x1xf32>
    %34 = vector.extract %33[0, 0, 0] : f32 from vector<1x1x1xf32>
    %35 = vector.broadcast %34 : f32 to vector<1x1xf32>
    %36 = arith.addf %30, %35 : vector<1x1xf32>
    %c0_11 = arith.constant 0 : index
    %c0_12 = arith.constant 0 : index
    %37 = vector.load %arg4[%c0_11, %c0_12] : memref<1x1xf32, #tpu.memory_space<vmem>>, vector<1x1xf32>
    tpu.vector_store %arg4[%c0_11, %c0_12], %36 {strides = array<i32>} : memref<1x1xf32, #tpu.memory_space<vmem>>, vector<1x1xf32>,
    %c0_i32_13 = arith.constant 0 : i32
    %38 = arith.cmpi eq, %arg0, %c0_i32_13 : i32
    %39 = arith.extui %38 : i1 to i32
    %c0_i32_14 = arith.constant 0 : i32
    %40 = arith.cmpi ne, %39, %c0_i32_14 : i32
    scf.if %40 {
      %c0_15 = arith.constant 0 : index
      %c0_16 = arith.constant 0 : index
      %41 = vector.load %arg4[%c0_15, %c0_16] : memref<1x1xf32, #tpu.memory_space<vmem>>, vector<1x1xf32>
      %cst_17 = arith.constant 1.000000e-01 : f32
      %42 = vector.broadcast %cst_17 : f32 to vector<1x1xf32>
      %43 = arith.mulf %41, %42 : vector<1x1xf32>
      %c0_18 = arith.constant 0 : index
      %c0_19 = arith.constant 0 : index
      %44 = vector.load %arg3[%c0_18, %c0_19] : memref<1x1xf32, #tpu.memory_space<vmem>>, vector<1x1xf32>
      tpu.vector_store %arg3[%c0_18, %c0_19], %43 {strides = array<i32>} : memref<1x1xf32, #tpu.memory_space<vmem>>, vector<1x1xf32>,
    } else {
    }
    return
  }
  func.func @transform_0(%arg0: i32) -> (i32, i32) {
    %c0_i32 = arith.constant 0 : i32
    %c0_i32_0 = arith.constant 0 : i32
    return %arg0, %c0_i32 : i32, i32
  }
  func.func @transform_1(%arg0: i32) -> (i32, i32) {
    %c0_i32 = arith.constant 0 : i32
    %c0_i32_0 = arith.constant 0 : i32
    return %arg0, %c0_i32 : i32, i32
  }
  func.func @transform_2(%arg0: i32) -> (i32, i32) {
    %c0_i32 = arith.constant 0 : i32
    %c0_i32_0 = arith.constant 0 : i32
    %c0_i32_1 = arith.constant 0 : i32
    return %c0_i32, %c0_i32_0 : i32, i32
  }
}

</mosaic_0001>

<llo_original>
// kernel: focal_loss.1
$region0: #{focal_loss.1}
  #allocation0 [shape = 'u32[]', space=smem, size = 0x4, offset = 0x4, fixed_abs, tag = 'smem constant byte address 0x4 - core index']
  #allocation1 [shape = 'u32[144,128]{1,0:T(1,128)}', space=vmem, size = 0x12000, scoped, tag = 'internal scratch']
  #allocation2 [shape = 'f32[1,1]{1,0:T(1,128)}', space=vmem, size = 0x200, scoped, tag = 'scratch operand']
  %s0 = inlined_call_operand.vmem [shape: f32[16,128], index: 0, kind: input, shape index: {}]
  %s1 = inlined_call_operand.vmem [shape: s32[16,1], index: 1, kind: input, shape index: {}]
  %s2 = inlined_call_operand.hbm [shape: f32[1,1], index: 2, kind: output, shape index: {}]
  %s3 = sld [smem:[#allocation0]]
  $region26: #{focal_loss.1} parent=0
    _
  %s5 = ssub.s32 1, %s3
  %s6 = scalar_select 0, %s5, %s3
  $region1: #{focal_loss.1} parent=0
    #allocation3 [shape = 'u8[512]{0}', space=vmem, size = 0x400, scoped, tag = 'output window, operand 0, single buffered']
    #allocation4 [shape = 's32[1]{0}', space=sflag, size = 0x4, scoped, tag = 'scoped memory for focal_loss.1']
    %7 = vsyncpa [#allocation4], 0
    // Predicated region
    $region2: #{focal_loss.1} parent=1 // pred_check
      _
    $region3: #{focal_loss.1} parent=1 // pred_check_branch
      %9 = sbr.rel (0) target = $region5
    $region4: #{focal_loss.1} parent=1 // pred_region
      _
    $region5: #{focal_loss.1} parent=1 // pred_fallthru
      _
    // Predicated region
    $region6: #{focal_loss.1} parent=1 // pred_check
      _
    $region7: #{focal_loss.1} parent=1 // pred_check_branch
      %11 = sbr.rel (0) target = $region9
    $region8: #{focal_loss.1} parent=1 // pred_region
      _
    $region9: #{focal_loss.1} parent=1 // pred_fallthru
      _
    %p12 = scmp.eq.s32.totalorder 0, 0
    // Predicated region
    $region10: #{focal_loss.1} parent=1 // pred_check
      %p13 = pneg %p12
    $region11: #{focal_loss.1} parent=1 // pred_check_branch
      %15 = sbr.rel (%p13) target = $region13
    $region12: #{focal_loss.1} parent=1 // pred_region
      %vm16 = vcmask 0
      %17 = vst.msk [vmem:[#allocation2] sm:$0x1] %vm16, 0.0
    $region13: #{focal_loss.1} parent=1 // pred_fallthru
      _
    %v18 = vld [vmem:[%s0] sm:$0xff]
    %v19 = vld [vmem:[%s0 + $0x8] sm:$0xff]
    %v20 = vld [vmem:[%s1] sm:$0xff]
    %v21 = vld [vmem:[%s1 + $0x8] sm:$0xff]
    %22 = vmax.xlane.f32.xlu0 %v18
    %v23 = vpop.xlane.xlu0 %22
    %24 = vmax.xlane.f32.xlu0 %v19
    %v25 = vpop.xlane.xlu0 %24
    %v26 = vsub.f32 %v18, %v23
    %v27 = vsub.f32 %v19, %v25
    %v28 = vmul.f32 %v26, 1.442695
    %v29 = vpow.pop %v28
    %v30 = vmul.f32 %v27, 1.442695
    %v31 = vpow.pop %v30
    %32 = vadd.xlane.f32.xlu0 %v29
    %v33 = vpop.xlane.xlu0 %32
    %34 = vadd.xlane.f32.xlu0 %v31
    %v35 = vpop.xlane.xlu0 %34
    %v36 = vlog2.pop %v33
    %v37 = vmul.f32 %v36, 0.6931472
    %v38 = vlog2.pop %v35
    %v39 = vmul.f32 %v38, 0.6931472
    %v40 = vadd.f32 %v23, %v37
    %v41 = vadd.f32 %v25, %v39
    %v42 = vlaneseq
    %v43 = vand.u32 %v42, 127
    %44 = vset.pattern.permute.xlu0 0
    %45 = vperm.xlu0 %44, %v20
    %v46 = vpop.permute.xlu0 %45
    %47 = vset.pattern.permute.xlu0 0
    %48 = vperm.xlu0 %47, %v21
    %v49 = vpop.permute.xlu0 %48
    %vm50 = vcmp.eq.s32.totalorder %v43, %v46
    %vm51 = vcmp.eq.s32.totalorder %v43, %v49
    %v52 = vsel %vm50, %v18, 0.0
    %v53 = vsel %vm51, %v19, 0.0
    %54 = vadd.xlane.f32.xlu0 %v52
    %v55 = vpop.xlane.xlu0 %54
    %56 = vadd.xlane.f32.xlu0 %v53
    %v57 = vpop.xlane.xlu0 %56
    %v58 = vsub.f32 %v40, %v55
    %v59 = vsub.f32 %v41, %v57
    %v60 = vlaneseq
    %v61 = vshrl.u32 %v60, 7
    %v62 = vadd.s32 %v61, 8
    %s63 = smul.u32 0, 16
    %v64 = vstv %s63
    %v65 = vadd.s32 %v61, %v64
    %v66 = vadd.s32 %v62, %v64
    %vm67 = vcmp.lt.s32.totalorder %v65, 10
    %vm68 = vcmp.lt.s32.totalorder %v66, 10
    %v69 = vsel %vm67, %v58, 0.0
    %v70 = vsel %vm68, %v59, 0.0
    %v71 = vld [vmem:[#allocation2] sm:$0x1]
    %vm72 = vcmask 7168
    %v73 = vsel %vm72, %v69, 0.0
    %v74 = vsel %vm72, %v70, 0.0
    %v75 = vadd.f32 %v73, %v74
    %76 = vadd.xlane.f32.xlu0 %v75
    %v77 = vpop.xlane.xlu0 %76
    %v78 = vrot.slane %v77, 4
    %v79 = vadd.f32 %v77, %v78
    %v80 = vrot.slane %v79, 2
    %v81 = vadd.f32 %v79, %v80
    %v82 = vrot.slane %v81, 1
    %v83 = vadd.f32 %v81, %v82
    %s84 = vtos %v83
    %v85 = vstv %s84
    %v86 = vadd.f32 %v71, %v85
    %vm87 = vcmask 0
    %88 = vst.msk [vmem:[#allocation2] sm:$0x1] %vm87, %v86
    // Predicated region
    $region14: #{focal_loss.1} parent=1 // pred_check
      %p89 = pneg %p12
    $region15: #{focal_loss.1} parent=1 // pred_check_branch
      %91 = sbr.rel (%p89) target = $region17
    $region16: #{focal_loss.1} parent=1 // pred_region
      %v92 = vld [vmem:[#allocation2] sm:$0x1]
      %v93 = vmul.f32 %v92, 0.1
      %94 = vst.msk [vmem:[#allocation3] sm:$0x1] %vm87, %v93
    $region17: #{focal_loss.1} parent=1 // pred_fallthru
      _
    // Predicated region
    $region18: #{focal_loss.1} parent=1 // pred_check
      _
    $region19: #{focal_loss.1} parent=1 // pred_check_branch
      %96 = sbr.rel (0) target = $region21
    $region20: #{focal_loss.1} parent=1 // pred_region
      %s98 = ssub.s32 16, 16
      %99 = vsyncadd [#allocation4], %s98
      %s101 = sshll.u32 [#allocation3], 4
      %s102 = int_to_ptr.vmem [resolvable:$true] %s101
      %104 = dma.vmem_to_hbm [thread:$0]  %s102, 16, %s2, [#allocation4]
    $region21: #{focal_loss.1} parent=1 // pred_fallthru
      _
    // Predicated region
    $region22: #{focal_loss.1} parent=1 // pred_check
      _
    $region23: #{focal_loss.1} parent=1 // pred_check_branch
      %106 = sbr.rel (0) target = $region25
    $region24: #{focal_loss.1} parent=1 // pred_region
      %107 = dma.done [#allocation4], 16
    $region25: #{focal_loss.1} parent=1 // pred_fallthru
      _
    %108 = vsyncpa [#allocation4], 1

</llo_original>
